<compile_context>
chip_gen: v6e
topology: v6e:2x2x1
jax: 0.10.0
libtpu: 0.0.40
codegen_flags: <defaults>
</compile_context>

<pallas_src>
import jax
import jax.numpy as jnp
from jax.experimental import pallas as pl
from jax.experimental.pallas import tpu as pltpu

# ----- small synthetic config (mirrors BART-style decoder_layers / heads / d_model) -----
PRESEQLEN = 8          # self.preseqlen (200 in the original; small here)
N_EMBD = 32            # config.d_model
MID_DIM = 64           # self.mid_dim (800 in the original)
N_LAYER = 2            # config.decoder_layers
N_HEAD = 4             # config.decoder_attention_heads
MATCH_N_EMBD = N_EMBD // N_HEAD
OUT_DIM = N_LAYER * 2 * N_EMBD   # match_n_layer * 2 * n_embd


def _round_up(x, m):
    return ((x + m - 1) // m) * m


def _pick_slice_group(two_l, e):
    # Group (layer, k/v) output slices per grid step: keep the per-step W2 / output
    # tile at <= 2048 output columns (VMEM-friendly even on v7x's 64 MiB) while
    # keeping the step count low and stores lane-dense.
    best = 1
    for tj in range(1, two_l + 1):
        if two_l % tj == 0 and tj * e <= 2048:
            best = tj
    return best


# ---------------------------- Pallas kernel -------------------------------------------
def fused_prefix_mlp(x, w1, b1, w2, b2):
    """x:  (G, S_pad, D)      bf16   (batch-deduped prefix embeddings, G = 3 branches)
       w1: (G, D, M_pad)      bf16
       b1: (G, 1, M_pad)      f32
       w2: (G, 2L, M_pad, E)  bf16   (output columns pre-split into (layer,k/v) slices)
       b2: (G, 2L, 1, E)      f32
       ->  (G, 2L, S_pad, E)  bf16"""
    G, S_pad, D = x.shape
    _, two_l, M, E = w2.shape
    tj = _pick_slice_group(two_l, E)
    grid = (G, two_l // tj)

    def kernel(x_ref, w1_ref, b1_ref, w2_ref, b2_ref, o_ref, h_ref):
        # h is cached across the j sweep.  This is only valid because the j axis is
        # innermost and marked "arbitrary" - do not reorder or mark it "parallel".
        @pl.when(pl.program_id(1) == 0)
        def _():
            h = jnp.dot(x_ref[...], w1_ref[...], preferred_element_type=jnp.float32)
            h_ref[...] = jnp.tanh(h + b1_ref[...]).astype(h_ref.dtype)

        # tj small (2-4): static unroll over the grouped output slices.
        for t in range(tj):
            y = jnp.dot(h_ref[...], w2_ref[t], preferred_element_type=jnp.float32)
            o_ref[t] = (y + b2_ref[t]).astype(o_ref.dtype)

    return pl.pallas_call(
        kernel,
        out_shape=jax.ShapeDtypeStruct((G, two_l, S_pad, E), jnp.bfloat16),
        grid=grid,
        in_specs=[
            pl.BlockSpec((None, S_pad, D), lambda g, j: (g, 0, 0)),     # activations
            pl.BlockSpec((None, D, M), lambda g, j: (g, 0, 0)),         # W1 (per branch)
            pl.BlockSpec((None, 1, M), lambda g, j: (g, 0, 0)),         # b1
            pl.BlockSpec((None, tj, M, E), lambda g, j: (g, j, 0, 0)),  # W2 slice group
            pl.BlockSpec((None, tj, 1, E), lambda g, j: (g, j, 0, 0)),  # b2 slice group
        ],
        out_specs=pl.BlockSpec((None, tj, S_pad, E), lambda g, j: (g, j, 0, 0)),
        scratch_shapes=[pltpu.VMEM((S_pad, M), jnp.bfloat16)],          # cached h
        compiler_params=pltpu.CompilerParams(
            dimension_semantics=("parallel", "arbitrary"),
            vmem_limit_bytes=64 * 1024 * 1024),
    )(x, w1, b1, w2, b2)


# ---------------------------- parameter prep (one-time) --------------------------------
def prepare_kernel_params(params):
    """Pad MID_DIM to a lane multiple (zero cols of W1 / zero rows of W2: tanh(0)=0, so
    results are unchanged) and reshape W2/b2 into per-(layer,k/v) slices so the kernel
    output layout matches the target permute."""
    m_pad = _round_up(MID_DIM, 128)
    two_l = 2 * N_LAYER

    w1 = jnp.pad(params["w1"], ((0, 0), (0, 0), (0, m_pad - MID_DIM)))
    b1 = jnp.pad(params["b1"], ((0, 0), (0, 0), (0, m_pad - MID_DIM)))
    # (3, M, OUT) -> (3, M, 2L, E) -> (3, 2L, M, E) -> pad M with zero rows
    w2 = jnp.transpose(params["w2"].reshape(3, MID_DIM, two_l, N_EMBD), (0, 2, 1, 3))
    w2 = jnp.pad(w2, ((0, 0), (0, 0), (0, m_pad - MID_DIM), (0, 0)))
    b2 = params["b2"].reshape(3, two_l, 1, N_EMBD)

    return {
        "input_tokens": params["input_tokens"],
        "wte": params["wte"], "wte_dec": params["wte_dec"], "wte_enc": params["wte_enc"],
        "w1": w1.astype(jnp.bfloat16), "b1": b1.astype(jnp.float32),
        "w2": w2.astype(jnp.bfloat16), "b2": b2.astype(jnp.float32),
    }


# ---------------------------- prompt construction --------------------------------------
def get_prompt(kparams, bsz, sample_size=1):
    old_bsz = bsz
    bsz = bsz * sample_size
    S = PRESEQLEN
    tok = kparams["input_tokens"]

    # Batch-deduped: one set of S embedding rows per branch (every batch replica is
    # identical in the original module - input_tokens is simply expanded over batch).
    # Branch order: 0 = decoder prompt (wte), 1 = cross-attn (wte_dec), 2 = encoder (wte_enc)
    x_stack = jnp.stack([
        jnp.take(kparams["wte"], tok, axis=0),
        jnp.take(kparams["wte_dec"], tok, axis=0),
        jnp.take(kparams["wte_enc"], tok, axis=0),
    ], axis=0).astype(jnp.bfloat16)                                    # (3, S, D)

    s_pad = _round_up(S, 16)                                           # bf16 sublane packing
    x_stack = jnp.pad(x_stack, ((0, 0), (0, s_pad - S), (0, 0)))

    y = fused_prefix_mlp(x_stack, kparams["w1"], kparams["b1"],
                         kparams["w2"], kparams["b2"])                 # (3, 2L, s_pad, E) bf16

    # TODO(synk): nn.Dropout(0.2) treated as inference-mode identity.
    def split_layers(y_branch, nb):
        # (2L, s_pad, E) -> (2L, S, H, dh) -> (2L, H, S, dh) -> broadcast over batch
        kv = y_branch[:, :S].reshape(2 * N_LAYER, S, N_HEAD, MATCH_N_EMBD)
        kv = jnp.transpose(kv, (0, 2, 1, 3))
        kv = jnp.broadcast_to(kv[:, None],
                              (2 * N_LAYER, nb, N_HEAD, S, MATCH_N_EMBD))
        return [kv[2 * i:2 * i + 2] for i in range(N_LAYER)]

    pkv = split_layers(y[0], bsz)
    pkv_dec = split_layers(y[1], bsz)
    pkv_enc = split_layers(y[2], old_bsz)

    result = []
    for i in range(N_LAYER):
        kv, kv_dec, kv_enc = pkv[i], pkv_dec[i], pkv_enc[i]
        result.append({
            "decoder_prompt": {
                "prev_key": kv[0],
                "prev_value": kv[1],
                "prev_key_padding_mask": jnp.zeros((bsz, S), dtype=jnp.bool_),
            },
            "cross_attention_prompt": {
                "prev_key": kv_dec[0],
                "prev_value": kv_dec[1],
                "prev_key_padding_mask": jnp.zeros((bsz, S), dtype=jnp.bool_),
            },
            "encoder_prompt": {
                "prev_key": kv_enc[0],
                "prev_value": kv_enc[1],
                "prev_key_padding_mask": jnp.zeros((old_bsz, S), dtype=jnp.bool_),
            },
        })
    return result


# forward: bsz = input_ids.shape[0]; past_prompt = get_prompt(bsz); seq2seq not translated.
def forward(kparams, input_ids):
    bsz = input_ids.shape[0]
    past_prompt = get_prompt(kparams, bsz=bsz)
    # TODO(synk): seq2seq_model(**input, past_prompt=past_prompt) has no Pallas equivalent.
    return past_prompt


# ---------------------------- parameter init (deterministic) ---------------------------
def init_params(key):
    ks = jax.random.split(key, 16)

    def lin_w(k, fan_in, fan_out):
        return jax.random.normal(k, (fan_in, fan_out), jnp.float32) * 0.02

    def lin_b(k, fan_out):
        return jax.random.normal(k, (fan_out,), jnp.float32) * 0.02

    # per-branch MLPs stacked on a leading branch axis (decoder / cross-attn / encoder)
    w1 = jnp.stack([lin_w(ks[4], N_EMBD, MID_DIM),
                    lin_w(ks[8], N_EMBD, MID_DIM),
                    lin_w(ks[12], N_EMBD, MID_DIM)]).astype(jnp.bfloat16)
    b1 = jnp.stack([lin_b(ks[5], MID_DIM),
                    lin_b(ks[9], MID_DIM),
                    lin_b(ks[13], MID_DIM)]).reshape(3, 1, MID_DIM)
    w2 = jnp.stack([lin_w(ks[6], MID_DIM, OUT_DIM),
                    lin_w(ks[10], MID_DIM, OUT_DIM),
                    lin_w(ks[14], MID_DIM, OUT_DIM)]).astype(jnp.bfloat16)
    b2 = jnp.stack([lin_b(ks[7], OUT_DIM),
                    lin_b(ks[11], OUT_DIM),
                    lin_b(ks[15], OUT_DIM)]).reshape(3, 1, OUT_DIM)

    return {
        "input_tokens": jax.random.randint(ks[0], (PRESEQLEN,), 0, PRESEQLEN, jnp.int32),
        "wte": jax.random.normal(ks[1], (PRESEQLEN, N_EMBD), jnp.float32) * 0.02,
        "wte_dec": jax.random.normal(ks[2], (PRESEQLEN, N_EMBD), jnp.float32) * 0.02,
        "wte_enc": jax.random.normal(ks[3], (PRESEQLEN, N_EMBD), jnp.float32) * 0.02,
        "w1": w1, "b1": b1, "w2": w2, "b2": b2,
    }


# ---------------------------- reference (pure JAX, same bf16 math) ----------------------
def ref_branch(input_tokens, nb, wte, w1, b1, w2, b2):
    emb = jnp.take(wte, input_tokens, axis=0).astype(jnp.bfloat16)      # (S, D)
    h = jnp.tanh(jnp.dot(emb, w1, preferred_element_type=jnp.float32) + b1)
    y = jnp.dot(h.astype(jnp.bfloat16), w2, preferred_element_type=jnp.float32) + b2
    y = jnp.broadcast_to(y[None], (nb, PRESEQLEN, OUT_DIM))
    pkv = y.reshape(nb, PRESEQLEN, N_LAYER * 2, N_HEAD, MATCH_N_EMBD)
    return jnp.transpose(pkv, (2, 0, 3, 1, 4))                          # (L*2, nb, H, S, dh)


if __name__ == "__main__":
    key = jax.random.PRNGKey(0)
    pkey, ikey = jax.random.split(key)
    params = init_params(pkey)
    kparams = prepare_kernel_params(params)   # one-time kernel-layout prep

    # synthetic input: only shape[0] (batch) matters for the prefix computation
    input_ids = jax.random.randint(ikey, (2, 6), 0, 100, jnp.int32)

    past_prompt = forward(kparams, input_ids)
    jax.block_until_ready(jax.tree_util.tree_leaves(past_prompt))

    # validate against pure-JAX reference (same bf16-input / f32-accumulate math;
    # kernel output is bf16 -> slightly loosened tolerances)
    ref_dec = ref_branch(params["input_tokens"], 2, params["wte"],
                         params["w1"][0], params["b1"][0], params["w2"][0], params["b2"][0])
    ref_enc = ref_branch(params["input_tokens"], 2, params["wte_enc"],
                         params["w1"][2], params["b1"][2], params["w2"][2], params["b2"][2])

    got_k0 = past_prompt[0]["decoder_prompt"]["prev_key"]
    got_v0 = past_prompt[0]["decoder_prompt"]["prev_value"]
    got_k1e = past_prompt[1]["encoder_prompt"]["prev_key"]

    assert got_k0.shape == (2, N_HEAD, PRESEQLEN, MATCH_N_EMBD)
    assert got_k1e.shape == (2, N_HEAD, PRESEQLEN, MATCH_N_EMBD)
    assert got_k0.dtype == jnp.bfloat16
    assert jnp.allclose(got_k0.astype(jnp.float32), ref_dec[0], atol=1e-3, rtol=2e-2)
    assert jnp.allclose(got_v0.astype(jnp.float32), ref_dec[1], atol=1e-3, rtol=2e-2)
    assert jnp.allclose(got_k1e.astype(jnp.float32), ref_enc[2], atol=1e-3, rtol=2e-2)
    assert past_prompt[0]["decoder_prompt"]["prev_key_padding_mask"].dtype == jnp.bool_
    assert past_prompt[0]["cross_attention_prompt"]["prev_key"].shape == (2, N_HEAD, PRESEQLEN, MATCH_N_EMBD)

    print("KERNEL_OK")
</pallas_src>

<mosaic_0001>
module attributes {stable_mosaic.version = 11 : i64} {
  func.func @kernel(%arg0: i32, %arg1: i32, %arg2: memref<1x16x32xbf16, #tpu.memory_space<vmem>>, %arg3: memref<1x32x128xbf16, #tpu.memory_space<vmem>>, %arg4: memref<1x1x128xf32, #tpu.memory_space<vmem>>, %arg5: memref<1x4x128x32xbf16, #tpu.memory_space<vmem>>, %arg6: memref<1x4x1x32xf32, #tpu.memory_space<vmem>>, %arg7: memref<1x4x16x32xbf16, #tpu.memory_space<vmem>>, %arg8: memref<16x128xbf16, #tpu.memory_space<vmem>>) attributes {dimension_semantics = [#tpu.dimension_semantics<parallel>, #tpu.dimension_semantics<arbitrary>], iteration_bounds = array<i64: 3, 1>, scalar_prefetch = 0 : i64, scratch_operands = 1 : i64, tpu.core_type = #tpu.core_type<tc>, window_params = [{transform_indices = @transform_0, window_bounds = array<i64: 1, 16, 32>}, {transform_indices = @transform_1, window_bounds = array<i64: 1, 32, 128>}, {transform_indices = @transform_2, window_bounds = array<i64: 1, 1, 128>}, {transform_indices = @transform_3, window_bounds = array<i64: 1, 4, 128, 32>}, {transform_indices = @transform_4, window_bounds = array<i64: 1, 4, 1, 32>}, {transform_indices = @transform_5, window_bounds = array<i64: 1, 4, 16, 32>}]} {
    %c0_i32 = arith.constant 0 : i32
    %0 = arith.cmpi eq, %arg1, %c0_i32 : i32
    %1 = arith.extui %0 : i1 to i32
    %c0_i32_0 = arith.constant 0 : i32
    %2 = arith.cmpi ne, %1, %c0_i32_0 : i32
    scf.if %2 {
      %c0_56 = arith.constant 0 : index
      %c0_57 = arith.constant 0 : index
      %c0_58 = arith.constant 0 : index
      %51 = vector.load %arg2[%c0_56, %c0_57, %c0_58] : memref<1x16x32xbf16, #tpu.memory_space<vmem>>, vector<1x16x32xbf16>
      %52 = vector.shape_cast %51 : vector<1x16x32xbf16> to vector<16x32xbf16>
      %c0_59 = arith.constant 0 : index
      %c0_60 = arith.constant 0 : index
      %c0_61 = arith.constant 0 : index
      %53 = vector.load %arg3[%c0_59, %c0_60, %c0_61] : memref<1x32x128xbf16, #tpu.memory_space<vmem>>, vector<1x32x128xbf16>
      %54 = vector.shape_cast %53 : vector<1x32x128xbf16> to vector<32x128xbf16>
      %cst_62 = arith.constant dense<0.000000e+00> : vector<16x128xf32>
      %55 = tpu.matmul %52, %54, %cst_62 {dimension_numbers = #tpu.dot_dimension_numbers<[1], [0], [0], [1], [0, 0, 1, 1], [], []>} : vector<16x32xbf16>, vector<32x128xbf16>, vector<16x128xf32> -> vector<16x128xf32>
      %c0_63 = arith.constant 0 : index
      %c0_64 = arith.constant 0 : index
      %c0_65 = arith.constant 0 : index
      %56 = vector.load %arg4[%c0_63, %c0_64, %c0_65] : memref<1x1x128xf32, #tpu.memory_space<vmem>>, vector<1x1x128xf32>
      %57 = vector.shape_cast %56 : vector<1x1x128xf32> to vector<1x128xf32>
      %58 = vector.broadcast %57 : vector<1x128xf32> to vector<16x128xf32>
      %59 = arith.addf %55, %58 : vector<16x128xf32>
      %60 = math.tanh %59 : vector<16x128xf32>
      %61 = arith.truncf %60 : vector<16x128xf32> to vector<16x128xbf16>
      %c0_66 = arith.constant 0 : index
      %c0_67 = arith.constant 0 : index
      %62 = vector.load %arg8[%c0_66, %c0_67] : memref<16x128xbf16, #tpu.memory_space<vmem>>, vector<16x128xbf16>
      tpu.vector_store %arg8[%c0_66, %c0_67], %61 {strides = array<i32>} : memref<16x128xbf16, #tpu.memory_space<vmem>>, vector<16x128xbf16>,
    } else {
    }
    %c0 = arith.constant 0 : index
    %c0_1 = arith.constant 0 : index
    %3 = vector.load %arg8[%c0, %c0_1] : memref<16x128xbf16, #tpu.memory_space<vmem>>, vector<16x128xbf16>
    %c0_2 = arith.constant 0 : index
    %c0_3 = arith.constant 0 : index
    %c0_4 = arith.constant 0 : index
    %c0_5 = arith.constant 0 : index
    %4 = vector.load %arg5[%c0_2, %c0_3, %c0_4, %c0_5] : memref<1x4x128x32xbf16, #tpu.memory_space<vmem>>, vector<1x1x128x32xbf16>
    %5 = vector.shape_cast %4 : vector<1x1x128x32xbf16> to vector<128x32xbf16>
    %cst = arith.constant dense<0.000000e+00> : vector<16x32xf32>
    %6 = tpu.matmul %3, %5, %cst {dimension_numbers = #tpu.dot_dimension_numbers<[1], [0], [0], [1], [0, 0, 1, 1], [], []>} : vector<16x128xbf16>, vector<128x32xbf16>, vector<16x32xf32> -> vector<16x32xf32>
    %c0_6 = arith.constant 0 : index
    %c0_7 = arith.constant 0 : index
    %c0_8 = arith.constant 0 : index
    %c0_9 = arith.constant 0 : index
    %7 = vector.load %arg6[%c0_6, %c0_7, %c0_8, %c0_9] : memref<1x4x1x32xf32, #tpu.memory_space<vmem>>, vector<1x1x1x32xf32>
    %8 = vector.shape_cast %7 : vector<1x1x1x32xf32> to vector<1x32xf32>
    %9 = vector.broadcast %8 : vector<1x32xf32> to vector<16x32xf32>
    %10 = arith.addf %6, %9 : vector<16x32xf32>
    %11 = arith.truncf %10 : vector<16x32xf32> to vector<16x32xbf16>
    %c0_10 = arith.constant 0 : index
    %c0_11 = arith.constant 0 : index
    %c0_12 = arith.constant 0 : index
    %c0_13 = arith.constant 0 : index
    %12 = vector.load %arg7[%c0_10, %c0_11, %c0_12, %c0_13] : memref<1x4x16x32xbf16, #tpu.memory_space<vmem>>, vector<1x1x16x32xbf16>
    %13 = vector.shape_cast %12 : vector<1x1x16x32xbf16> to vector<16x32xbf16>
    %14 = vector.shape_cast %11 : vector<16x32xbf16> to vector<1x1x16x32xbf16>
    tpu.vector_store %arg7[%c0_10, %c0_11, %c0_12, %c0_13], %14 {strides = array<i32>} : memref<1x4x16x32xbf16, #tpu.memory_space<vmem>>, vector<1x1x16x32xbf16>,
    %c0_14 = arith.constant 0 : index
    %c0_15 = arith.constant 0 : index
    %15 = vector.load %arg8[%c0_14, %c0_15] : memref<16x128xbf16, #tpu.memory_space<vmem>>, vector<16x128xbf16>
    %c0_16 = arith.constant 0 : index
    %c1 = arith.constant 1 : index
    %c0_17 = arith.constant 0 : index
    %c0_18 = arith.constant 0 : index
    %16 = vector.load %arg5[%c0_16, %c1, %c0_17, %c0_18] : memref<1x4x128x32xbf16, #tpu.memory_space<vmem>>, vector<1x1x128x32xbf16>
    %17 = vector.shape_cast %16 : vector<1x1x128x32xbf16> to vector<128x32xbf16>
    %cst_19 = arith.constant dense<0.000000e+00> : vector<16x32xf32>
    %18 = tpu.matmul %15, %17, %cst_19 {dimension_numbers = #tpu.dot_dimension_numbers<[1], [0], [0], [1], [0, 0, 1, 1], [], []>} : vector<16x128xbf16>, vector<128x32xbf16>, vector<16x32xf32> -> vector<16x32xf32>
    %c0_20 = arith.constant 0 : index
    %c1_21 = arith.constant 1 : index
    %c0_22 = arith.constant 0 : index
    %c0_23 = arith.constant 0 : index
    %19 = vector.load %arg6[%c0_20, %c1_21, %c0_22, %c0_23] : memref<1x4x1x32xf32, #tpu.memory_space<vmem>>, vector<1x1x1x32xf32>
    %20 = vector.shape_cast %19 : vector<1x1x1x32xf32> to vector<1x32xf32>
    %21 = vector.broadcast %20 : vector<1x32xf32> to vector<16x32xf32>
    %22 = arith.addf %18, %21 : vector<16x32xf32>
    %23 = arith.truncf %22 : vector<16x32xf32> to vector<16x32xbf16>
    %c0_24 = arith.constant 0 : index
    %c1_25 = arith.constant 1 : index
    %c0_26 = arith.constant 0 : index
    %c0_27 = arith.constant 0 : index
    %24 = vector.load %arg7[%c0_24, %c1_25, %c0_26, %c0_27] : memref<1x4x16x32xbf16, #tpu.memory_space<vmem>>, vector<1x1x16x32xbf16>
    %25 = vector.shape_cast %24 : vector<1x1x16x32xbf16> to vector<16x32xbf16>
    %26 = vector.shape_cast %23 : vector<16x32xbf16> to vector<1x1x16x32xbf16>
    tpu.vector_store %arg7[%c0_24, %c1_25, %c0_26, %c0_27], %26 {strides = array<i32>} : memref<1x4x16x32xbf16, #tpu.memory_space<vmem>>, vector<1x1x16x32xbf16>,
    %c0_28 = arith.constant 0 : index
    %c0_29 = arith.constant 0 : index
    %27 = vector.load %arg8[%c0_28, %c0_29] : memref<16x128xbf16, #tpu.memory_space<vmem>>, vector<16x128xbf16>
    %c0_30 = arith.constant 0 : index
    %c2 = arith.constant 2 : index
    %c0_31 = arith.constant 0 : index
    %c0_32 = arith.constant 0 : index
    %28 = vector.load %arg5[%c0_30, %c2, %c0_31, %c0_32] : memref<1x4x128x32xbf16, #tpu.memory_space<vmem>>, vector<1x1x128x32xbf16>
    %29 = vector.shape_cast %28 : vector<1x1x128x32xbf16> to vector<128x32xbf16>
    %cst_33 = arith.constant dense<0.000000e+00> : vector<16x32xf32>
    %30 = tpu.matmul %27, %29, %cst_33 {dimension_numbers = #tpu.dot_dimension_numbers<[1], [0], [0], [1], [0, 0, 1, 1], [], []>} : vector<16x128xbf16>, vector<128x32xbf16>, vector<16x32xf32> -> vector<16x32xf32>
    %c0_34 = arith.constant 0 : index
    %c2_35 = arith.constant 2 : index
    %c0_36 = arith.constant 0 : index
    %c0_37 = arith.constant 0 : index
    %31 = vector.load %arg6[%c0_34, %c2_35, %c0_36, %c0_37] : memref<1x4x1x32xf32, #tpu.memory_space<vmem>>, vector<1x1x1x32xf32>
    %32 = vector.shape_cast %31 : vector<1x1x1x32xf32> to vector<1x32xf32>
    %33 = vector.broadcast %32 : vector<1x32xf32> to vector<16x32xf32>
    %34 = arith.addf %30, %33 : vector<16x32xf32>
    %35 = arith.truncf %34 : vector<16x32xf32> to vector<16x32xbf16>
    %c0_38 = arith.constant 0 : index
    %c2_39 = arith.constant 2 : index
    %c0_40 = arith.constant 0 : index
    %c0_41 = arith.constant 0 : index
    %36 = vector.load %arg7[%c0_38, %c2_39, %c0_40, %c0_41] : memref<1x4x16x32xbf16, #tpu.memory_space<vmem>>, vector<1x1x16x32xbf16>
    %37 = vector.shape_cast %36 : vector<1x1x16x32xbf16> to vector<16x32xbf16>
    %38 = vector.shape_cast %35 : vector<16x32xbf16> to vector<1x1x16x32xbf16>
    tpu.vector_store %arg7[%c0_38, %c2_39, %c0_40, %c0_41], %38 {strides = array<i32>} : memref<1x4x16x32xbf16, #tpu.memory_space<vmem>>, vector<1x1x16x32xbf16>,
    %c0_42 = arith.constant 0 : index
    %c0_43 = arith.constant 0 : index
    %39 = vector.load %arg8[%c0_42, %c0_43] : memref<16x128xbf16, #tpu.memory_space<vmem>>, vector<16x128xbf16>
    %c0_44 = arith.constant 0 : index
    %c3 = arith.constant 3 : index
    %c0_45 = arith.constant 0 : index
    %c0_46 = arith.constant 0 : index
    %40 = vector.load %arg5[%c0_44, %c3, %c0_45, %c0_46] : memref<1x4x128x32xbf16, #tpu.memory_space<vmem>>, vector<1x1x128x32xbf16>
    %41 = vector.shape_cast %40 : vector<1x1x128x32xbf16> to vector<128x32xbf16>
    %cst_47 = arith.constant dense<0.000000e+00> : vector<16x32xf32>
    %42 = tpu.matmul %39, %41, %cst_47 {dimension_numbers = #tpu.dot_dimension_numbers<[1], [0], [0], [1], [0, 0, 1, 1], [], []>} : vector<16x128xbf16>, vector<128x32xbf16>, vector<16x32xf32> -> vector<16x32xf32>
    %c0_48 = arith.constant 0 : index
    %c3_49 = arith.constant 3 : index
    %c0_50 = arith.constant 0 : index
    %c0_51 = arith.constant 0 : index
    %43 = vector.load %arg6[%c0_48, %c3_49, %c0_50, %c0_51] : memref<1x4x1x32xf32, #tpu.memory_space<vmem>>, vector<1x1x1x32xf32>
    %44 = vector.shape_cast %43 : vector<1x1x1x32xf32> to vector<1x32xf32>
    %45 = vector.broadcast %44 : vector<1x32xf32> to vector<16x32xf32>
    %46 = arith.addf %42, %45 : vector<16x32xf32>
    %47 = arith.truncf %46 : vector<16x32xf32> to vector<16x32xbf16>
    %c0_52 = arith.constant 0 : index
    %c3_53 = arith.constant 3 : index
    %c0_54 = arith.constant 0 : index
    %c0_55 = arith.constant 0 : index
    %48 = vector.load %arg7[%c0_52, %c3_53, %c0_54, %c0_55] : memref<1x4x16x32xbf16, #tpu.memory_space<vmem>>, vector<1x1x16x32xbf16>
    %49 = vector.shape_cast %48 : vector<1x1x16x32xbf16> to vector<16x32xbf16>
    %50 = vector.shape_cast %47 : vector<16x32xbf16> to vector<1x1x16x32xbf16>
    tpu.vector_store %arg7[%c0_52, %c3_53, %c0_54, %c0_55], %50 {strides = array<i32>} : memref<1x4x16x32xbf16, #tpu.memory_space<vmem>>, vector<1x1x16x32xbf16>,
    return
  }
  func.func @transform_0(%arg0: i32, %arg1: i32) -> (i32, i32, i32) {
    %c0_i32 = arith.constant 0 : i32
    %c0_i32_0 = arith.constant 0 : i32
    %c0_i32_1 = arith.constant 0 : i32
    return %arg0, %c0_i32, %c0_i32_0 : i32, i32, i32
  }
  func.func @transform_1(%arg0: i32, %arg1: i32) -> (i32, i32, i32) {
    %c0_i32 = arith.constant 0 : i32
    %c0_i32_0 = arith.constant 0 : i32
    %c0_i32_1 = arith.constant 0 : i32
    return %arg0, %c0_i32, %c0_i32_0 : i32, i32, i32
  }
  func.func @transform_2(%arg0: i32, %arg1: i32) -> (i32, i32, i32) {
    %c0_i32 = arith.constant 0 : i32
    %c0_i32_0 = arith.constant 0 : i32
    %c0_i32_1 = arith.constant 0 : i32
    return %arg0, %c0_i32, %c0_i32_0 : i32, i32, i32
  }
  func.func @transform_3(%arg0: i32, %arg1: i32) -> (i32, i32, i32, i32) {
    %c0_i32 = arith.constant 0 : i32
    %c0_i32_0 = arith.constant 0 : i32
    %c0_i32_1 = arith.constant 0 : i32
    return %arg0, %arg1, %c0_i32, %c0_i32_0 : i32, i32, i32, i32
  }
  func.func @transform_4(%arg0: i32, %arg1: i32) -> (i32, i32, i32, i32) {
    %c0_i32 = arith.constant 0 : i32
    %c0_i32_0 = arith.constant 0 : i32
    %c0_i32_1 = arith.constant 0 : i32
    return %arg0, %arg1, %c0_i32, %c0_i32_0 : i32, i32, i32, i32
  }
  func.func @transform_5(%arg0: i32, %arg1: i32) -> (i32, i32, i32, i32) {
    %c0_i32 = arith.constant 0 : i32
    %c0_i32_0 = arith.constant 0 : i32
    %c0_i32_1 = arith.constant 0 : i32
    return %arg0, %arg1, %c0_i32, %c0_i32_0 : i32, i32, i32, i32
  }
}

</mosaic_0001>

<llo_original>
// kernel: tpu_custom_call.1
$region0: #{tpu_custom_call.1}
  #allocation0 [shape = 'u32[]', space=smem, size = 0x4, offset = 0x4, fixed_abs, tag = 'smem constant byte address 0x4 - core index']
  #allocation1 [shape = 'u32[144,128]{1,0:T(1,128)}', space=vmem, size = 0x12000, scoped, tag = 'internal scratch']
  #allocation2 [shape = 'bf16[16,128]{1,0:T(8,128)(2,1)}', space=vmem, size = 0x1000, scoped, tag = 'scratch operand']
  %s0 = inlined_call_operand.vmem [shape: bf16[3,16,32], index: 0, kind: input, shape index: {}]
  %s1 = inlined_call_operand.vmem [shape: bf16[3,32,128], index: 1, kind: input, shape index: {}]
  %s2 = inlined_call_operand.vmem [shape: f32[3,1,128], index: 2, kind: input, shape index: {}]
  %s3 = inlined_call_operand.vmem [shape: bf16[3,4,128,32], index: 3, kind: input, shape index: {}]
  %s4 = inlined_call_operand.vmem [shape: f32[3,4,1,32], index: 4, kind: input, shape index: {}]
  %s5 = inlined_call_operand.hbm [shape: bf16[3,4,16,32], index: 5, kind: output, shape index: {}]
  %s6 = sld [smem:[#allocation0]]
  $region57: #{tpu_custom_call.1} parent=0
    _
  %s8 = ssub.s32 1, %s6
  %s9 = scalar_select 0, %s8, %s6
  $region1: #{tpu_custom_call.1} parent=0
    #allocation3 [shape = 'u8[32768]{0}', space=vmem, size = 0x8000, scoped, tag = 'output window, operand 0']
    #allocation4 [shape = 's32[2]{0}', space=sflag, size = 0x8, scoped, tag = 'scoped memory for tpu_custom_call.1']
    %10 = vsyncpa [#allocation4], 0
    %s11 = scalar_lea.sflag [#allocation4], 1
    %12 = vsyncpa %s11, 0
    loop: start=0, step=1, limit=5
    $region2: #{tpu_custom_call.1} parent=1 // loop_pre_header
      _
    $region3: #{tpu_custom_call.1} parent=1 // loop_header
      %s14 = sphi 0, %s18
      %p15 = scmp.ge.s32.totalorder %s14, 5
      %s21 = sphi 0, %s33
      %s22 = sphi 0, %s29
      %s23 = sphi 0, %s21
      %s24 = sphi 0, %s22
      %s25 = sphi 0, %s23
      %s26 = sphi 0, %s24
      %s36 = sphi 0, %s38
      %s39 = sphi 0, %s36
      %s40 = sphi 0, %s39
      %s56 = sphi 0, %s40
      %s62 = sphi 0, %s64
      %s65 = sphi 0, %s62
      %s66 = sphi 0, %s65
      %s82 = sphi 0, %s66
      %s88 = sphi 0, %s90
      %s91 = sphi 0, %s88
      %s92 = sphi 0, %s91
      %s108 = sphi 0, %s92
      %s116 = sphi 0, %s118
      %s119 = sphi 0, %s116
      %s120 = sphi 0, %s119
      %s136 = sphi 0, %s120
      %s144 = sphi 0, %s146
      %s147 = sphi 0, %s144
      %s148 = sphi 0, %s147
      %s164 = sphi 0, %s148
      %s172 = sphi 0, %s174
      %s175 = sphi 0, %s172
      %s176 = sphi 0, %s175
      %s192 = sphi 0, %s176
    $region4: #{tpu_custom_call.1} parent=1 // loop_header_branch
      %17 = sbr.rel (%p15) target = $region8
    $region5: #{tpu_custom_call.1} parent=1 // loop_body
      %s19 = ssub.s32 %s14, 1
      %s20 = ssub.s32 %s14, 2
      %s27 = sadd.s32 1, %s22
      %p28 = scmp.ge.s32.totalorder %s27, 1
      %s29 = scalar_select %p28, 0, %s27
      %s30 = sadd.s32 1, %s21
      %s31 = scalar_select %p28, %s30, %s21
      %p32 = scmp.ge.s32.totalorder %s31, 3
      %s33 = scalar_select %p32, 0, %s31
      %s34 = ssub.s32 %s21, %s33
      %p35 = scmp.eq.s32.totalorder %s34, 0
      %s37 = sadd.s32 %s36, 1
      %s38 = scalar_select %p35, %s36, %s37
      %p41 = pneg %p35
      %p42 = scmp.eq.s32.totalorder %s14, 2
      %p43 = por %p41, %p42
      %p44 = scmp.ne.s32.totalorder %s36, %s39
      %p45 = scmp.eq.s32.totalorder %s14, 0
      %p46 = por %p44, %p45
      %p47 = scmp.ne.s32.totalorder %s36, %s39
      %p48 = scmp.eq.s32.totalorder %s19, 2
      %p49 = por %p47, %p48
      %p50 = scmp.ne.s32.totalorder %s39, %s40
      %p51 = scmp.eq.s32.totalorder %s19, 0
      %p52 = por %p50, %p51
      %p53 = scmp.ne.s32.totalorder %s39, %s40
      %p54 = scmp.eq.s32.totalorder %s20, 2
      %p55 = por %p53, %p54
      %p57 = scmp.ne.s32.totalorder %s40, %s56
      %p58 = scmp.eq.s32.totalorder %s20, 0
      %p59 = por %p57, %p58
      %s60 = ssub.s32 %s21, %s33
      %p61 = scmp.eq.s32.totalorder %s60, 0
      %s63 = sadd.s32 %s62, 1
      %s64 = scalar_select %p61, %s62, %s63
      %p67 = pneg %p61
      %p68 = scmp.eq.s32.totalorder %s14, 2
      %p69 = por %p67, %p68
      %p70 = scmp.ne.s32.totalorder %s62, %s65
      %p71 = scmp.eq.s32.totalorder %s14, 0
      %p72 = por %p70, %p71
      %p73 = scmp.ne.s32.totalorder %s62, %s65
      %p74 = scmp.eq.s32.totalorder %s19, 2
      %p75 = por %p73, %p74
      %p76 = scmp.ne.s32.totalorder %s65, %s66
      %p77 = scmp.eq.s32.totalorder %s19, 0
      %p78 = por %p76, %p77
      %p79 = scmp.ne.s32.totalorder %s65, %s66
      %p80 = scmp.eq.s32.totalorder %s20, 2
      %p81 = por %p79, %p80
      %p83 = scmp.ne.s32.totalorder %s66, %s82
      %p84 = scmp.eq.s32.totalorder %s20, 0
      %p85 = por %p83, %p84
      %s86 = ssub.s32 %s21, %s33
      %p87 = scmp.eq.s32.totalorder %s86, 0
      %s89 = sadd.s32 %s88, 1
      %s90 = scalar_select %p87, %s88, %s89
      %p93 = pneg %p87
      %p94 = scmp.eq.s32.totalorder %s14, 2
      %p95 = por %p93, %p94
      %p96 = scmp.ne.s32.totalorder %s88, %s91
      %p97 = scmp.eq.s32.totalorder %s14, 0
      %p98 = por %p96, %p97
      %p99 = scmp.ne.s32.totalorder %s88, %s91
      %p100 = scmp.eq.s32.totalorder %s19, 2
      %p101 = por %p99, %p100
      %p102 = scmp.ne.s32.totalorder %s91, %s92
      %p103 = scmp.eq.s32.totalorder %s19, 0
      %p104 = por %p102, %p103
      %p105 = scmp.ne.s32.totalorder %s91, %s92
      %p106 = scmp.eq.s32.totalorder %s20, 2
      %p107 = por %p105, %p106
      %p109 = scmp.ne.s32.totalorder %s92, %s108
      %p110 = scmp.eq.s32.totalorder %s20, 0
      %p111 = por %p109, %p110
      %s112 = ssub.s32 %s21, %s33
      %s113 = ssub.s32 %s22, %s29
      %s114 = sor.u32 %s112, %s113
      %p115 = scmp.eq.s32.totalorder %s114, 0
      %s117 = sadd.s32 %s116, 1
      %s118 = scalar_select %p115, %s116, %s117
      %p121 = pneg %p115
      %p122 = scmp.eq.s32.totalorder %s14, 2
      %p123 = por %p121, %p122
      %p124 = scmp.ne.s32.totalorder %s116, %s119
      %p125 = scmp.eq.s32.totalorder %s14, 0
      %p126 = por %p124, %p125
      %p127 = scmp.ne.s32.totalorder %s116, %s119
      %p128 = scmp.eq.s32.totalorder %s19, 2
      %p129 = por %p127, %p128
      %p130 = scmp.ne.s32.totalorder %s119, %s120
      %p131 = scmp.eq.s32.totalorder %s19, 0
      %p132 = por %p130, %p131
      %p133 = scmp.ne.s32.totalorder %s119, %s120
      %p134 = scmp.eq.s32.totalorder %s20, 2
      %p135 = por %p133, %p134
      %p137 = scmp.ne.s32.totalorder %s120, %s136
      %p138 = scmp.eq.s32.totalorder %s20, 0
      %p139 = por %p137, %p138
      %s140 = ssub.s32 %s21, %s33
      %s141 = ssub.s32 %s22, %s29
      %s142 = sor.u32 %s140, %s141
      %p143 = scmp.eq.s32.totalorder %s142, 0
      %s145 = sadd.s32 %s144, 1
      %s146 = scalar_select %p143, %s144, %s145
      %p149 = pneg %p143
      %p150 = scmp.eq.s32.totalorder %s14, 2
      %p151 = por %p149, %p150
      %p152 = scmp.ne.s32.totalorder %s144, %s147
      %p153 = scmp.eq.s32.totalorder %s14, 0
      %p154 = por %p152, %p153
      %p155 = scmp.ne.s32.totalorder %s144, %s147
      %p156 = scmp.eq.s32.totalorder %s19, 2
      %p157 = por %p155, %p156
      %p158 = scmp.ne.s32.totalorder %s147, %s148
      %p159 = scmp.eq.s32.totalorder %s19, 0
      %p160 = por %p158, %p159
      %p161 = scmp.ne.s32.totalorder %s147, %s148
      %p162 = scmp.eq.s32.totalorder %s20, 2
      %p163 = por %p161, %p162
      %p165 = scmp.ne.s32.totalorder %s148, %s164
      %p166 = scmp.eq.s32.totalorder %s20, 0
      %p167 = por %p165, %p166
      %s168 = ssub.s32 %s21, %s33
      %s169 = ssub.s32 %s22, %s29
      %s170 = sor.u32 %s168, %s169
      %p171 = scmp.eq.s32.totalorder %s170, 0
      %s173 = sadd.s32 %s172, 1
      %s174 = scalar_select %p171, %s172, %s173
      %p177 = pneg %p171
      %p178 = scmp.eq.s32.totalorder %s14, 2
      %p179 = por %p177, %p178
      %p180 = scmp.ne.s32.totalorder %s172, %s175
      %p181 = scmp.eq.s32.totalorder %s14, 0
      %p182 = por %p180, %p181
      %p183 = scmp.ne.s32.totalorder %s172, %s175
      %p184 = scmp.eq.s32.totalorder %s19, 2
      %p185 = por %p183, %p184
      %p186 = scmp.ne.s32.totalorder %s175, %s176
      %p187 = scmp.eq.s32.totalorder %s19, 0
      %p188 = por %p186, %p187
      %p189 = scmp.ne.s32.totalorder %s175, %s176
      %p190 = scmp.eq.s32.totalorder %s20, 2
      %p191 = por %p189, %p190
      %p193 = scmp.ne.s32.totalorder %s176, %s192
      %p194 = scmp.eq.s32.totalorder %s20, 0
      %p195 = por %p193, %p194
      %p196 = scmp.le.s32.totalorder 1, %s14
      %p197 = scmp.lt.s32.totalorder %s14, 4
      %p198 = pnand %p196, %p197
      %p199 = pneg %p198
      // Predicated region
      $region9: #{tpu_custom_call.1} parent=5 // pred_check
        _
      $region10: #{tpu_custom_call.1} parent=5 // pred_check_branch
        %201 = sbr.rel (%p198) target = $region12
      $region11: #{tpu_custom_call.1} parent=5 // pred_region
        %s202 = ssub.s32 %s14, 1
      $region12: #{tpu_custom_call.1} parent=5 // pred_fallthru
        _
      %p203 = scmp.lt.s32.totalorder %s14, 3
      // Predicated region
      $region13: #{tpu_custom_call.1} parent=5 // pred_check
        %p204 = pneg %p203
      $region14: #{tpu_custom_call.1} parent=5 // pred_check_branch
        %206 = sbr.rel (%p204) target = $region16
      $region15: #{tpu_custom_call.1} parent=5 // pred_region
        // Predicated region
        $region17: #{tpu_custom_call.1} parent=15 // pred_check
          %p207 = pneg %p46
        $region18: #{tpu_custom_call.1} parent=15 // pred_check_branch
          %209 = sbr.rel (%p207) target = $region20
        $region19: #{tpu_custom_call.1} parent=15 // pred_region
          %p210 = scmp.lt.s32.totalorder %s21, 2
          %s211 = scalar_select %p210, %s21, 2
          %s212 = smul.addr %s211, 2
          %s213 = smul.addr %s212, 4
          %s214 = scalar_lea.vmem %s0, %s213
        $region20: #{tpu_custom_call.1} parent=15 // pred_fallthru
          _
        // Predicated region
        $region21: #{tpu_custom_call.1} parent=15 // pred_check
          %p215 = pneg %p72
        $region22: #{tpu_custom_call.1} parent=15 // pred_check_branch
          %217 = sbr.rel (%p215) target = $region24
        $region23: #{tpu_custom_call.1} parent=15 // pred_region
          %p218 = scmp.lt.s32.totalorder %s21, 2
          %s219 = scalar_select %p218, %s21, 2
          %s220 = smul.addr %s219, 4
          %s221 = smul.addr %s220, 4
          %s222 = scalar_lea.vmem %s1, %s221
        $region24: #{tpu_custom_call.1} parent=15 // pred_fallthru
          _
        // Predicated region
        $region25: #{tpu_custom_call.1} parent=15 // pred_check
          %p223 = pneg %p98
        $region26: #{tpu_custom_call.1} parent=15 // pred_check_branch
          %225 = sbr.rel (%p223) target = $region28
        $region27: #{tpu_custom_call.1} parent=15 // pred_region
          %p226 = scmp.lt.s32.totalorder %s21, 2
          %s227 = scalar_select %p226, %s21, 2
          %s228 = scalar_lea.vmem %s2, %s227
        $region28: #{tpu_custom_call.1} parent=15 // pred_fallthru
          _
        // Predicated region
        $region29: #{tpu_custom_call.1} parent=15 // pred_check
          %p229 = pneg %p126
        $region30: #{tpu_custom_call.1} parent=15 // pred_check_branch
          %231 = sbr.rel (%p229) target = $region32
        $region31: #{tpu_custom_call.1} parent=15 // pred_region
          %s232 = smul.u32 4, %s22
          %p233 = scmp.lt.s32.totalorder %s21, 2
          %s234 = scalar_select %p233, %s21, 2
          %p235 = scmp.lt.s32.totalorder %s232, 3
          %s236 = scalar_select %p235, %s232, 3
          %s237 = smul.addr %s236, 16
          %s238 = smul.addr %s234, 64
          %s239 = sadd.s32 %s237, %s238
          %s240 = smul.addr %s239, 4
          %s241 = scalar_lea.vmem %s3, %s240
          %s242 = smul.u32 4, %s22
        $region32: #{tpu_custom_call.1} parent=15 // pred_fallthru
          _
        // Predicated region
        $region33: #{tpu_custom_call.1} parent=15 // pred_check
          %p243 = pneg %p154
        $region34: #{tpu_custom_call.1} parent=15 // pred_check_branch
          %245 = sbr.rel (%p243) target = $region36
        $region35: #{tpu_custom_call.1} parent=15 // pred_region
          %s246 = smul.u32 4, %s22
          %p247 = scmp.lt.s32.totalorder %s21, 2
          %s248 = scalar_select %p247, %s21, 2
          %p249 = scmp.lt.s32.totalorder %s246, 3
          %s250 = scalar_select %p249, %s246, 3
          %s251 = smul.addr %s248, 4
          %s252 = sadd.s32 %s250, %s251
          %s253 = scalar_lea.vmem %s4, %s252
          %s254 = smul.u32 4, %s22
        $region36: #{tpu_custom_call.1} parent=15 // pred_fallthru
          _
      $region16: #{tpu_custom_call.1} parent=5 // pred_fallthru
        _
      %p255 = scmp.le.s32.totalorder 1, %s14
      %p256 = scmp.lt.s32.totalorder %s14, 4
      %p257 = pnand %p255, %p256
      %p258 = pneg %p257
      // Predicated region
      $region37: #{tpu_custom_call.1} parent=5 // pred_check
        _
      $region38: #{tpu_custom_call.1} parent=5 // pred_check_branch
        %260 = sbr.rel (%p257) target = $region40
      $region39: #{tpu_custom_call.1} parent=5 // pred_region
        %s261 = ssub.s32 %s14, 1
        %p262 = scmp.lt.s32.totalorder %s23, 2
        %s263 = scalar_select %p262, %s23, 2
        %s264 = smul.addr %s263, 2
        %s265 = smul.addr %s264, 4
        %s266 = scalar_lea.vmem %s0, %s265
        %p267 = pneg %p52
        %p268 = pneg %p49
        %p269 = scmp.lt.s32.totalorder %s23, 2
        %s270 = scalar_select %p269, %s23, 2
        %s271 = smul.addr %s270, 4
        %s272 = smul.addr %s271, 4
        %s273 = scalar_lea.vmem %s1, %s272
        %p274 = pneg %p78
        %p275 = pneg %p75
        %p276 = scmp.lt.s32.totalorder %s23, 2
        %s277 = scalar_select %p276, %s23, 2
        %s278 = scalar_lea.vmem %s2, %s277
        %p279 = pneg %p104
        %p280 = pneg %p101
        %s281 = smul.u32 4, %s24
        %p282 = scmp.lt.s32.totalorder %s23, 2
        %s283 = scalar_select %p282, %s23, 2
        %p284 = scmp.lt.s32.totalorder %s281, 3
        %s285 = scalar_select %p284, %s281, 3
        %s286 = smul.addr %s285, 16
        %s287 = smul.addr %s283, 64
        %s288 = sadd.s32 %s286, %s287
        %s289 = smul.addr %s288, 4
        %s290 = scalar_lea.vmem %s3, %s289
        %p291 = pneg %p132
        %p292 = pneg %p129
        %s293 = smul.u32 4, %s24
        %p294 = scmp.lt.s32.totalorder %s23, 2
        %s295 = scalar_select %p294, %s23, 2
        %p296 = scmp.lt.s32.totalorder %s293, 3
        %s297 = scalar_select %p296, %s293, 3
        %s298 = smul.addr %s295, 4
        %s299 = sadd.s32 %s297, %s298
        %s300 = scalar_lea.vmem %s4, %s299
        %p301 = pneg %p160
        %p302 = pneg %p157
        %p303 = pneg %p188
        %p304 = pneg %p185
        %s305 = sand.u32 %s175, 1
        %s306 = scalar_lea.sflag [#allocation4], %s305
        %s307 = sand.u32 %s175, 1
        %s308 = smul.addr %s307, 32
        %s309 = scalar_lea.vmem [#allocation3], %s308
        %p310 = scmp.lt.s32.totalorder %s23, 2
        %s311 = scalar_select %p310, %s23, 2
        %s312 = smul.addr %s311, 2
        %s313 = smul.addr %s312, 4
        %s314 = scalar_lea.vmem %s0, %s313
        %p315 = scmp.lt.s32.totalorder %s23, 2
        %s316 = scalar_select %p315, %s23, 2
        %s317 = smul.addr %s316, 4
        %s318 = smul.addr %s317, 4
        %s319 = scalar_lea.vmem %s1, %s318
        %p320 = scmp.lt.s32.totalorder %s23, 2
        %s321 = scalar_select %p320, %s23, 2
        %s322 = scalar_lea.vmem %s2, %s321
        %s323 = smul.u32 4, %s24
        %p324 = scmp.lt.s32.totalorder %s23, 2
        %s325 = scalar_select %p324, %s23, 2
        %p326 = scmp.lt.s32.totalorder %s323, 3
        %s327 = scalar_select %p326, %s323, 3
        %s328 = smul.addr %s327, 16
        %s329 = smul.addr %s325, 64
        %s330 = sadd.s32 %s328, %s329
        %s331 = smul.addr %s330, 4
        %s332 = scalar_lea.vmem %s3, %s331
        %s333 = smul.u32 4, %s24
        %s334 = smul.u32 4, %s24
        %p335 = scmp.lt.s32.totalorder %s23, 2
        %s336 = scalar_select %p335, %s23, 2
        %p337 = scmp.lt.s32.totalorder %s334, 3
        %s338 = scalar_select %p337, %s334, 3
        %s339 = smul.addr %s336, 4
        %s340 = sadd.s32 %s338, %s339
        %s341 = scalar_lea.vmem %s4, %s340
        %s342 = smul.u32 4, %s24
        %s343 = smul.u32 4, %s24
        %p345 = scmp.eq.s32.totalorder %s24, 0
        // Predicated region
        $region41: #{tpu_custom_call.1} parent=39 // pred_check
          %p346 = pneg %p345
        $region42: #{tpu_custom_call.1} parent=39 // pred_check_branch
          %348 = sbr.rel (%p346) target = $region44
        $region43: #{tpu_custom_call.1} parent=39 // pred_region
          %v349 = vld [vmem:[%s314] sm:$0xf]
          %v350 = vld [vmem:[%s314 + $0x4] sm:$0xf]
          %v351 = vld [vmem:[%s319] sm:$0xf]
          %v352 = vld [vmem:[%s319 + $0x4] sm:$0xf]
          %v353 = vld [vmem:[%s319 + $0x8] sm:$0xf]
          %v354 = vld [vmem:[%s319 + $0xc] sm:$0xf]
          %v355 = vld [vmem:[%s322] sm:$0x1]
          %v357 = vlaneseq
          %v358 = vshrl.u32 %v357, 7
          %v359 = vsub.s32 0, %v358
          %v360 = vrot.slane %v355, %v359
          %v364 = vunpack.c.l.b16 %v349
          %v365 = vunpack.c.l.b16 %v350
          %v366 = vpack.c.b16 %v365, %v364
          %v371 = vunpack.c.l.b16 %v351
          %v372 = vunpack.c.l.b16 %v352
          %v373 = vunpack.c.l.b16 %v353
          %v374 = vunpack.c.l.b16 %v354
          %v375 = vpack.c.b16 %v372, %v371
          %v376 = vpack.c.b16 %v374, %v373
          %vm379 = vcmask 261120
          %v381 = vsel %vm379, %v366, 0
          %383 = vmatprep.subr.bf16.mxu0 0
          %384 = vmatpush1.bf16.msra.mxu0 0
          %385 = vmatprep.subr.bf16.mxu0 0
          %386 = vmatpush1.bf16.msra.mxu0 0
          %387 = vmatprep.subr.bf16.mxu0 0
          %388 = vmatpush1.bf16.msra.mxu0 0
          %389 = vmatprep.subr.bf16.mxu0 0
          %390 = vmatpush1.bf16.msra.mxu0 0
          %391 = vmatprep.subr.bf16.mxu0 0
          %392 = vmatpush1.bf16.msra.mxu0 0
          %393 = vmatprep.subr.bf16.mxu0 0
          %394 = vmatpush1.bf16.msra.mxu0 0
          %395 = vmatprep.subr.bf16.mxu0 0
          %396 = vmatpush1.bf16.msra.mxu0 %v376
          %397 = vmatprep.subr.bf16.mxu0 0
          %398 = vmatpush1.bf16.msra.mxu0 %v375
          %399 = vmatprep.subr.bf16.mxu0 0
          %400 = vmatpush2.bf16.msra.mxu0 0
          %401 = vmatprep.subr.bf16.mxu0 0
          %402 = vmatpush2.bf16.msra.mxu0 0
          %403 = vmatprep.subr.bf16.mxu0 0
          %404 = vmatpush2.bf16.msra.mxu0 0
          %405 = vmatprep.subr.bf16.mxu0 0
          %406 = vmatpush2.bf16.msra.mxu0 0
          %407 = vmatprep.subr.bf16.mxu0 0
          %408 = vmatpush2.bf16.msra.mxu0 0
          %409 = vmatprep.subr.bf16.mxu0 0
          %410 = vmatpush2.bf16.msra.mxu0 0
          %411 = vmatprep.subr.bf16.mxu0 0
          %412 = vmatpush2.bf16.msra.mxu0 0
          %413 = vmatprep.subr.bf16.mxu0 0
          %414 = vmatpush2.bf16.msra.mxu0 0
          %415 = vmatprep.mubr.bf16.mxu0 0
          %416 = vmatmul.mubr.bf16.gmra.mxu0 %v381
          %v417 = vpop.f32.mrf.mxu0
          %v418 = vadd.f32 %v360, %v417
          %v419 = vpop.f32.mrf.mxu0
          %v420 = vpop.f32.mrf.mxu0
          %v421 = vadd.f32 %v360, %v420
          %v422 = vpop.f32.mrf.mxu0
          %423 = vdwg.mxu0
          %v424 = vtanh.pop %v418
          %v425 = vtanh.pop %v421
          %v426 = vpack.c.bf16 %v425, %v424
          %v428 = vunpack.c.l.b16 %v426
          %v429 = vunpack.c.h.b16 %v426
          %v430 = vpack.c.b16 %v428, %v428
          %v431 = vpack.c.b16 %v429, %v429
          %434 = vst [vmem:[#allocation2] sm:$0xf] %v430
          %435 = vst [vmem:[#allocation2 + $0x4] sm:$0xf] %v431
        $region44: #{tpu_custom_call.1} parent=39 // pred_fallthru
          _
        %v436 = vld [vmem:[#allocation2] sm:$0xf]
        %v437 = vld [vmem:[#allocation2 + $0x4] sm:$0xf]
        %v438 = vld [vmem:[%s332] sm:$0xf]
        %v439 = vld [vmem:[%s332 + $0x4] sm:$0xf]
        %v440 = vld [vmem:[%s332 + $0x8] sm:$0xf]
        %v441 = vld [vmem:[%s332 + $0xc] sm:$0xf]
        %v442 = vld [vmem:[%s332 + $0x10] sm:$0xf]
        %v443 = vld [vmem:[%s332 + $0x14] sm:$0xf]
        %v444 = vld [vmem:[%s332 + $0x18] sm:$0xf]
        %v445 = vld [vmem:[%s332 + $0x1c] sm:$0xf]
        %v446 = vld [vmem:[%s332 + $0x20] sm:$0xf]
        %v447 = vld [vmem:[%s332 + $0x24] sm:$0xf]
        %v448 = vld [vmem:[%s332 + $0x28] sm:$0xf]
        %v449 = vld [vmem:[%s332 + $0x2c] sm:$0xf]
        %v450 = vld [vmem:[%s332 + $0x30] sm:$0xf]
        %v451 = vld [vmem:[%s332 + $0x34] sm:$0xf]
        %v452 = vld [vmem:[%s332 + $0x38] sm:$0xf]
        %v453 = vld [vmem:[%s332 + $0x3c] sm:$0xf]
        %v454 = vld [vmem:[%s341] sm:$0x1]
        %v456 = vlaneseq
        %v457 = vshrl.u32 %v456, 7
        %v458 = vsub.s32 0, %v457
        %v459 = vrot.slane %v454, %v458
        %v463 = vunpack.c.l.b16 %v436
        %v464 = vunpack.c.l.b16 %v437
        %v465 = vpack.c.b16 %v464, %v463
        %v483 = vunpack.c.l.b16 %v438
        %v484 = vunpack.c.l.b16 %v439
        %v485 = vunpack.c.l.b16 %v440
        %v486 = vunpack.c.l.b16 %v441
        %v487 = vunpack.c.l.b16 %v442
        %v488 = vunpack.c.l.b16 %v443
        %v489 = vunpack.c.l.b16 %v444
        %v490 = vunpack.c.l.b16 %v445
        %v491 = vunpack.c.l.b16 %v446
        %v492 = vunpack.c.l.b16 %v447
        %v493 = vunpack.c.l.b16 %v448
        %v494 = vunpack.c.l.b16 %v449
        %v495 = vunpack.c.l.b16 %v450
        %v496 = vunpack.c.l.b16 %v451
        %v497 = vunpack.c.l.b16 %v452
        %v498 = vunpack.c.l.b16 %v453
        %v499 = vpack.c.b16 %v484, %v483
        %v500 = vpack.c.b16 %v486, %v485
        %v501 = vpack.c.b16 %v488, %v487
        %v502 = vpack.c.b16 %v490, %v489
        %v503 = vpack.c.b16 %v492, %v491
        %v504 = vpack.c.b16 %v494, %v493
        %v505 = vpack.c.b16 %v496, %v495
        %v506 = vpack.c.b16 %v498, %v497
        %515 = vmatprep.subr.bf16.mxu0 0
        %516 = vmatpush1.bf16.msra.mxu0 %v506
        %517 = vmatprep.subr.bf16.mxu0 0
        %518 = vmatpush1.bf16.msra.mxu0 %v505
        %519 = vmatprep.subr.bf16.mxu0 0
        %520 = vmatpush1.bf16.msra.mxu0 %v504
        %521 = vmatprep.subr.bf16.mxu0 0
        %522 = vmatpush1.bf16.msra.mxu0 %v503
        %523 = vmatprep.subr.bf16.mxu0 0
        %524 = vmatpush1.bf16.msra.mxu0 %v502
        %525 = vmatprep.subr.bf16.mxu0 0
        %526 = vmatpush1.bf16.msra.mxu0 %v501
        %527 = vmatprep.subr.bf16.mxu0 0
        %528 = vmatpush1.bf16.msra.mxu0 %v500
        %529 = vmatprep.subr.bf16.mxu0 0
        %530 = vmatpush1.bf16.msra.mxu0 %v499
        %531 = vmatprep.subr.bf16.mxu0 0
        %532 = vmatpush2.bf16.msra.mxu0 0
        %533 = vmatprep.subr.bf16.mxu0 0
        %534 = vmatpush2.bf16.msra.mxu0 0
        %535 = vmatprep.subr.bf16.mxu0 0
        %536 = vmatpush2.bf16.msra.mxu0 0
        %537 = vmatprep.subr.bf16.mxu0 0
        %538 = vmatpush2.bf16.msra.mxu0 0
        %539 = vmatprep.subr.bf16.mxu0 0
        %540 = vmatpush2.bf16.msra.mxu0 0
        %541 = vmatprep.subr.bf16.mxu0 0
        %542 = vmatpush2.bf16.msra.mxu0 0
        %543 = vmatprep.subr.bf16.mxu0 0
        %544 = vmatpush2.bf16.msra.mxu0 0
        %545 = vmatprep.subr.bf16.mxu0 0
        %546 = vmatpush2.bf16.msra.mxu0 0
        %547 = vmatprep.mubr.bf16.mxu0 0
        %548 = vmatmul.mubr.bf16.gmra.mxu0 %v465
        %v549 = vpop.f32.mrf.mxu0
        %v550 = vadd.f32 %v459, %v549
        %v551 = vpop.f32.mrf.mxu0
        %v552 = vpop.f32.mrf.mxu0
        %v553 = vadd.f32 %v459, %v552
        %v554 = vpop.f32.mrf.mxu0
        %555 = vdwg.mxu0
        %v556 = vpack.c.bf16 %v553, %v550
        %v558 = vunpack.c.l.b16 %v556
        %v559 = vunpack.c.h.b16 %v556
        %v560 = vpack.c.b16 %v558, %v558
        %v561 = vpack.c.b16 %v559, %v559
        %vm564 = vcmask 257024
        %565 = vst.msk [vmem:[%s309] sm:$0xf] %vm564, %v560
        %566 = vst.msk [vmem:[%s309 + $0x4] sm:$0xf] %vm564, %v561
        %v567 = vld [vmem:[#allocation2] sm:$0xf]
        %v568 = vld [vmem:[#allocation2 + $0x4] sm:$0xf]
        %s569 = scalar_lea.vmem %s332, 64
        %v570 = vld [vmem:[%s569] sm:$0xf]
        %v571 = vld [vmem:[%s569 + $0x4] sm:$0xf]
        %v572 = vld [vmem:[%s569 + $0x8] sm:$0xf]
        %v573 = vld [vmem:[%s569 + $0xc] sm:$0xf]
        %v574 = vld [vmem:[%s569 + $0x10] sm:$0xf]
        %v575 = vld [vmem:[%s569 + $0x14] sm:$0xf]
        %v576 = vld [vmem:[%s569 + $0x18] sm:$0xf]
        %v577 = vld [vmem:[%s569 + $0x1c] sm:$0xf]
        %v578 = vld [vmem:[%s569 + $0x20] sm:$0xf]
        %v579 = vld [vmem:[%s569 + $0x24] sm:$0xf]
        %v580 = vld [vmem:[%s569 + $0x28] sm:$0xf]
        %v581 = vld [vmem:[%s569 + $0x2c] sm:$0xf]
        %v582 = vld [vmem:[%s569 + $0x30] sm:$0xf]
        %v583 = vld [vmem:[%s569 + $0x34] sm:$0xf]
        %v584 = vld [vmem:[%s569 + $0x38] sm:$0xf]
        %v585 = vld [vmem:[%s569 + $0x3c] sm:$0xf]
        %s586 = scalar_lea.vmem %s341, 1
        %v587 = vld [vmem:[%s586] sm:$0x1]
        %v589 = vlaneseq
        %v590 = vshrl.u32 %v589, 7
        %v591 = vsub.s32 0, %v590
        %v592 = vrot.slane %v587, %v591
        %v596 = vunpack.c.l.b16 %v567
        %v597 = vunpack.c.l.b16 %v568
        %v598 = vpack.c.b16 %v597, %v596
        %v616 = vunpack.c.l.b16 %v570
        %v617 = vunpack.c.l.b16 %v571
        %v618 = vunpack.c.l.b16 %v572
        %v619 = vunpack.c.l.b16 %v573
        %v620 = vunpack.c.l.b16 %v574
        %v621 = vunpack.c.l.b16 %v575
        %v622 = vunpack.c.l.b16 %v576
        %v623 = vunpack.c.l.b16 %v577
        %v624 = vunpack.c.l.b16 %v578
        %v625 = vunpack.c.l.b16 %v579
        %v626 = vunpack.c.l.b16 %v580
        %v627 = vunpack.c.l.b16 %v581
        %v628 = vunpack.c.l.b16 %v582
        %v629 = vunpack.c.l.b16 %v583
        %v630 = vunpack.c.l.b16 %v584
        %v631 = vunpack.c.l.b16 %v585
        %v632 = vpack.c.b16 %v617, %v616
        %v633 = vpack.c.b16 %v619, %v618
        %v634 = vpack.c.b16 %v621, %v620
        %v635 = vpack.c.b16 %v623, %v622
        %v636 = vpack.c.b16 %v625, %v624
        %v637 = vpack.c.b16 %v627, %v626
        %v638 = vpack.c.b16 %v629, %v628
        %v639 = vpack.c.b16 %v631, %v630
        %648 = vmatprep.subr.bf16.mxu0 0
        %649 = vmatpush1.bf16.msra.mxu0 %v639
        %650 = vmatprep.subr.bf16.mxu0 0
        %651 = vmatpush1.bf16.msra.mxu0 %v638
        %652 = vmatprep.subr.bf16.mxu0 0
        %653 = vmatpush1.bf16.msra.mxu0 %v637
        %654 = vmatprep.subr.bf16.mxu0 0
        %655 = vmatpush1.bf16.msra.mxu0 %v636
        %656 = vmatprep.subr.bf16.mxu0 0
        %657 = vmatpush1.bf16.msra.mxu0 %v635
        %658 = vmatprep.subr.bf16.mxu0 0
        %659 = vmatpush1.bf16.msra.mxu0 %v634
        %660 = vmatprep.subr.bf16.mxu0 0
        %661 = vmatpush1.bf16.msra.mxu0 %v633
        %662 = vmatprep.subr.bf16.mxu0 0
        %663 = vmatpush1.bf16.msra.mxu0 %v632
        %664 = vmatprep.subr.bf16.mxu0 0
        %665 = vmatpush2.bf16.msra.mxu0 0
        %666 = vmatprep.subr.bf16.mxu0 0
        %667 = vmatpush2.bf16.msra.mxu0 0
        %668 = vmatprep.subr.bf16.mxu0 0
        %669 = vmatpush2.bf16.msra.mxu0 0
        %670 = vmatprep.subr.bf16.mxu0 0
        %671 = vmatpush2.bf16.msra.mxu0 0
        %672 = vmatprep.subr.bf16.mxu0 0
        %673 = vmatpush2.bf16.msra.mxu0 0
        %674 = vmatprep.subr.bf16.mxu0 0
        %675 = vmatpush2.bf16.msra.mxu0 0
        %676 = vmatprep.subr.bf16.mxu0 0
        %677 = vmatpush2.bf16.msra.mxu0 0
        %678 = vmatprep.subr.bf16.mxu0 0
        %679 = vmatpush2.bf16.msra.mxu0 0
        %680 = vmatprep.mubr.bf16.mxu0 0
        %681 = vmatmul.mubr.bf16.gmra.mxu0 %v598
        %v682 = vpop.f32.mrf.mxu0
        %v683 = vadd.f32 %v592, %v682
        %v684 = vpop.f32.mrf.mxu0
        %v685 = vpop.f32.mrf.mxu0
        %v686 = vadd.f32 %v592, %v685
        %v687 = vpop.f32.mrf.mxu0
        %688 = vdwg.mxu0
        %v689 = vpack.c.bf16 %v686, %v683
        %v691 = vunpack.c.l.b16 %v689
        %v692 = vunpack.c.h.b16 %v689
        %v693 = vpack.c.b16 %v691, %v691
        %v694 = vpack.c.b16 %v692, %v692
        %s697 = scalar_lea.vmem %s309, 8 [#allocation3]
        %698 = vst.msk [vmem:[%s697] sm:$0xf] %vm564, %v693
        %699 = vst.msk [vmem:[%s697 + $0x4] sm:$0xf] %vm564, %v694
        %v700 = vld [vmem:[#allocation2] sm:$0xf]
        %v701 = vld [vmem:[#allocation2 + $0x4] sm:$0xf]
        %s702 = scalar_lea.vmem %s332, 128
        %v703 = vld [vmem:[%s702] sm:$0xf]
        %v704 = vld [vmem:[%s702 + $0x4] sm:$0xf]
        %v705 = vld [vmem:[%s702 + $0x8] sm:$0xf]
        %v706 = vld [vmem:[%s702 + $0xc] sm:$0xf]
        %v707 = vld [vmem:[%s702 + $0x10] sm:$0xf]
        %v708 = vld [vmem:[%s702 + $0x14] sm:$0xf]
        %v709 = vld [vmem:[%s702 + $0x18] sm:$0xf]
        %v710 = vld [vmem:[%s702 + $0x1c] sm:$0xf]
        %v711 = vld [vmem:[%s702 + $0x20] sm:$0xf]
        %v712 = vld [vmem:[%s702 + $0x24] sm:$0xf]
        %v713 = vld [vmem:[%s702 + $0x28] sm:$0xf]
        %v714 = vld [vmem:[%s702 + $0x2c] sm:$0xf]
        %v715 = vld [vmem:[%s702 + $0x30] sm:$0xf]
        %v716 = vld [vmem:[%s702 + $0x34] sm:$0xf]
        %v717 = vld [vmem:[%s702 + $0x38] sm:$0xf]
        %v718 = vld [vmem:[%s702 + $0x3c] sm:$0xf]
        %s719 = scalar_lea.vmem %s341, 2
        %v720 = vld [vmem:[%s719] sm:$0x1]
        %v722 = vlaneseq
        %v723 = vshrl.u32 %v722, 7
        %v724 = vsub.s32 0, %v723
        %v725 = vrot.slane %v720, %v724
        %v729 = vunpack.c.l.b16 %v700
        %v730 = vunpack.c.l.b16 %v701
        %v731 = vpack.c.b16 %v730, %v729
        %v749 = vunpack.c.l.b16 %v703
        %v750 = vunpack.c.l.b16 %v704
        %v751 = vunpack.c.l.b16 %v705
        %v752 = vunpack.c.l.b16 %v706
        %v753 = vunpack.c.l.b16 %v707
        %v754 = vunpack.c.l.b16 %v708
        %v755 = vunpack.c.l.b16 %v709
        %v756 = vunpack.c.l.b16 %v710
        %v757 = vunpack.c.l.b16 %v711
        %v758 = vunpack.c.l.b16 %v712
        %v759 = vunpack.c.l.b16 %v713
        %v760 = vunpack.c.l.b16 %v714
        %v761 = vunpack.c.l.b16 %v715
        %v762 = vunpack.c.l.b16 %v716
        %v763 = vunpack.c.l.b16 %v717
        %v764 = vunpack.c.l.b16 %v718
        %v765 = vpack.c.b16 %v750, %v749
        %v766 = vpack.c.b16 %v752, %v751
        %v767 = vpack.c.b16 %v754, %v753
        %v768 = vpack.c.b16 %v756, %v755
        %v769 = vpack.c.b16 %v758, %v757
        %v770 = vpack.c.b16 %v760, %v759
        %v771 = vpack.c.b16 %v762, %v761
        %v772 = vpack.c.b16 %v764, %v763
        %781 = vmatprep.subr.bf16.mxu0 0
        %782 = vmatpush1.bf16.msra.mxu0 %v772
        %783 = vmatprep.subr.bf16.mxu0 0
        %784 = vmatpush1.bf16.msra.mxu0 %v771
        %785 = vmatprep.subr.bf16.mxu0 0
        %786 = vmatpush1.bf16.msra.mxu0 %v770
        %787 = vmatprep.subr.bf16.mxu0 0
        %788 = vmatpush1.bf16.msra.mxu0 %v769
        %789 = vmatprep.subr.bf16.mxu0 0
        %790 = vmatpush1.bf16.msra.mxu0 %v768
        %791 = vmatprep.subr.bf16.mxu0 0
        %792 = vmatpush1.bf16.msra.mxu0 %v767
        %793 = vmatprep.subr.bf16.mxu0 0
        %794 = vmatpush1.bf16.msra.mxu0 %v766
        %795 = vmatprep.subr.bf16.mxu0 0
        %796 = vmatpush1.bf16.msra.mxu0 %v765
        %797 = vmatprep.subr.bf16.mxu0 0
        %798 = vmatpush2.bf16.msra.mxu0 0
        %799 = vmatprep.subr.bf16.mxu0 0
        %800 = vmatpush2.bf16.msra.mxu0 0
        %801 = vmatprep.subr.bf16.mxu0 0
        %802 = vmatpush2.bf16.msra.mxu0 0
        %803 = vmatprep.subr.bf16.mxu0 0
        %804 = vmatpush2.bf16.msra.mxu0 0
        %805 = vmatprep.subr.bf16.mxu0 0
        %806 = vmatpush2.bf16.msra.mxu0 0
        %807 = vmatprep.subr.bf16.mxu0 0
        %808 = vmatpush2.bf16.msra.mxu0 0
        %809 = vmatprep.subr.bf16.mxu0 0
        %810 = vmatpush2.bf16.msra.mxu0 0
        %811 = vmatprep.subr.bf16.mxu0 0
        %812 = vmatpush2.bf16.msra.mxu0 0
        %813 = vmatprep.mubr.bf16.mxu0 0
        %814 = vmatmul.mubr.bf16.gmra.mxu0 %v731
        %v815 = vpop.f32.mrf.mxu0
        %v816 = vadd.f32 %v725, %v815
        %v817 = vpop.f32.mrf.mxu0
        %v818 = vpop.f32.mrf.mxu0
        %v819 = vadd.f32 %v725, %v818
        %v820 = vpop.f32.mrf.mxu0
        %821 = vdwg.mxu0
        %v822 = vpack.c.bf16 %v819, %v816
        %v824 = vunpack.c.l.b16 %v822
        %v825 = vunpack.c.h.b16 %v822
        %v826 = vpack.c.b16 %v824, %v824
        %v827 = vpack.c.b16 %v825, %v825
        %s830 = scalar_lea.vmem %s309, 16 [#allocation3]
        %831 = vst.msk [vmem:[%s830] sm:$0xf] %vm564, %v826
        %832 = vst.msk [vmem:[%s830 + $0x4] sm:$0xf] %vm564, %v827
        %v833 = vld [vmem:[#allocation2] sm:$0xf]
        %v834 = vld [vmem:[#allocation2 + $0x4] sm:$0xf]
        %s835 = scalar_lea.vmem %s332, 192
        %v836 = vld [vmem:[%s835] sm:$0xf]
        %v837 = vld [vmem:[%s835 + $0x4] sm:$0xf]
        %v838 = vld [vmem:[%s835 + $0x8] sm:$0xf]
        %v839 = vld [vmem:[%s835 + $0xc] sm:$0xf]
        %v840 = vld [vmem:[%s835 + $0x10] sm:$0xf]
        %v841 = vld [vmem:[%s835 + $0x14] sm:$0xf]
        %v842 = vld [vmem:[%s835 + $0x18] sm:$0xf]
        %v843 = vld [vmem:[%s835 + $0x1c] sm:$0xf]
        %v844 = vld [vmem:[%s835 + $0x20] sm:$0xf]
        %v845 = vld [vmem:[%s835 + $0x24] sm:$0xf]
        %v846 = vld [vmem:[%s835 + $0x28] sm:$0xf]
        %v847 = vld [vmem:[%s835 + $0x2c] sm:$0xf]
        %v848 = vld [vmem:[%s835 + $0x30] sm:$0xf]
        %v849 = vld [vmem:[%s835 + $0x34] sm:$0xf]
        %v850 = vld [vmem:[%s835 + $0x38] sm:$0xf]
        %v851 = vld [vmem:[%s835 + $0x3c] sm:$0xf]
        %s852 = scalar_lea.vmem %s341, 3
        %v853 = vld [vmem:[%s852] sm:$0x1]
        %v855 = vlaneseq
        %v856 = vshrl.u32 %v855, 7
        %v857 = vsub.s32 0, %v856
        %v858 = vrot.slane %v853, %v857
        %v862 = vunpack.c.l.b16 %v833
        %v863 = vunpack.c.l.b16 %v834
        %v864 = vpack.c.b16 %v863, %v862
        %v882 = vunpack.c.l.b16 %v836
        %v883 = vunpack.c.l.b16 %v837
        %v884 = vunpack.c.l.b16 %v838
        %v885 = vunpack.c.l.b16 %v839
        %v886 = vunpack.c.l.b16 %v840
        %v887 = vunpack.c.l.b16 %v841
        %v888 = vunpack.c.l.b16 %v842
        %v889 = vunpack.c.l.b16 %v843
        %v890 = vunpack.c.l.b16 %v844
        %v891 = vunpack.c.l.b16 %v845
        %v892 = vunpack.c.l.b16 %v846
        %v893 = vunpack.c.l.b16 %v847
        %v894 = vunpack.c.l.b16 %v848
        %v895 = vunpack.c.l.b16 %v849
        %v896 = vunpack.c.l.b16 %v850
        %v897 = vunpack.c.l.b16 %v851
        %v898 = vpack.c.b16 %v883, %v882
        %v899 = vpack.c.b16 %v885, %v884
        %v900 = vpack.c.b16 %v887, %v886
        %v901 = vpack.c.b16 %v889, %v888
        %v902 = vpack.c.b16 %v891, %v890
        %v903 = vpack.c.b16 %v893, %v892
        %v904 = vpack.c.b16 %v895, %v894
        %v905 = vpack.c.b16 %v897, %v896
        %914 = vmatprep.subr.bf16.mxu0 0
        %915 = vmatpush1.bf16.msra.mxu0 %v905
        %916 = vmatprep.subr.bf16.mxu0 0
        %917 = vmatpush1.bf16.msra.mxu0 %v904
        %918 = vmatprep.subr.bf16.mxu0 0
        %919 = vmatpush1.bf16.msra.mxu0 %v903
        %920 = vmatprep.subr.bf16.mxu0 0
        %921 = vmatpush1.bf16.msra.mxu0 %v902
        %922 = vmatprep.subr.bf16.mxu0 0
        %923 = vmatpush1.bf16.msra.mxu0 %v901
        %924 = vmatprep.subr.bf16.mxu0 0
        %925 = vmatpush1.bf16.msra.mxu0 %v900
        %926 = vmatprep.subr.bf16.mxu0 0
        %927 = vmatpush1.bf16.msra.mxu0 %v899
        %928 = vmatprep.subr.bf16.mxu0 0
        %929 = vmatpush1.bf16.msra.mxu0 %v898
        %930 = vmatprep.subr.bf16.mxu0 0
        %931 = vmatpush2.bf16.msra.mxu0 0
        %932 = vmatprep.subr.bf16.mxu0 0
        %933 = vmatpush2.bf16.msra.mxu0 0
        %934 = vmatprep.subr.bf16.mxu0 0
        %935 = vmatpush2.bf16.msra.mxu0 0
        %936 = vmatprep.subr.bf16.mxu0 0
        %937 = vmatpush2.bf16.msra.mxu0 0
        %938 = vmatprep.subr.bf16.mxu0 0
        %939 = vmatpush2.bf16.msra.mxu0 0
        %940 = vmatprep.subr.bf16.mxu0 0
        %941 = vmatpush2.bf16.msra.mxu0 0
        %942 = vmatprep.subr.bf16.mxu0 0
        %943 = vmatpush2.bf16.msra.mxu0 0
        %944 = vmatprep.subr.bf16.mxu0 0
        %945 = vmatpush2.bf16.msra.mxu0 0
        %946 = vmatprep.mubr.bf16.mxu0 0
        %947 = vmatmul.mubr.bf16.gmra.mxu0 %v864
        %v948 = vpop.f32.mrf.mxu0
        %v949 = vadd.f32 %v858, %v948
        %v950 = vpop.f32.mrf.mxu0
        %v951 = vpop.f32.mrf.mxu0
        %v952 = vadd.f32 %v858, %v951
        %v953 = vpop.f32.mrf.mxu0
        %954 = vdwg.mxu0
        %v955 = vpack.c.bf16 %v952, %v949
        %v957 = vunpack.c.l.b16 %v955
        %v958 = vunpack.c.h.b16 %v955
        %v959 = vpack.c.b16 %v957, %v957
        %v960 = vpack.c.b16 %v958, %v958
        %s963 = scalar_lea.vmem %s309, 24 [#allocation3]
        %964 = vst.msk [vmem:[%s963] sm:$0xf] %vm564, %v959
        %965 = vst.msk [vmem:[%s963 + $0x4] sm:$0xf] %vm564, %v960
        %s966 = sand.u32 %s175, 1
        %s967 = scalar_lea.sflag [#allocation4], %s966
        %s968 = sand.u32 %s175, 1
        %s969 = smul.addr %s968, 32
        %s970 = scalar_lea.vmem [#allocation3], %s969
        // Predicated region
        $region45: #{tpu_custom_call.1} parent=39 // pred_check
          %p971 = pneg %p185
        $region46: #{tpu_custom_call.1} parent=39 // pred_check_branch
          %973 = sbr.rel (%p971) target = $region48
        $region47: #{tpu_custom_call.1} parent=39 // pred_region
          %s974 = smul.u32 4, %s24
          %s976 = ssub.s32 512, 512
          %977 = vsyncadd %s967, %s976
          %s978 = smul.addr %s974, 2
          %s979 = smul.addr %s23, 8
          %s980 = sadd.s32 %s978, %s979
          %s981 = smul.addr %s980, 64
          %s982 = scalar_lea.hbm %s5, %s981
          %s983 = sshll.u32 %s970, 4
          %s984 = int_to_ptr.vmem [resolvable:$true] %s983
          %989 = dma.vmem_to_hbm [thread:$0]  %s984, 512, %s982, %s967, 64, 64, 4
        $region48: #{tpu_custom_call.1} parent=39 // pred_fallthru
          _
      $region40: #{tpu_custom_call.1} parent=5 // pred_fallthru
        _
      %p990 = scmp.le.s32.totalorder 2, %s14
      // Predicated region
      $region49: #{tpu_custom_call.1} parent=5 // pred_check
        %p991 = pneg %p990
      $region50: #{tpu_custom_call.1} parent=5 // pred_check_branch
        %993 = sbr.rel (%p991) target = $region52
      $region51: #{tpu_custom_call.1} parent=5 // pred_region
        %s994 = ssub.s32 %s14, 2
        // Predicated region
        $region53: #{tpu_custom_call.1} parent=51 // pred_check
          %p995 = pneg %p191
        $region54: #{tpu_custom_call.1} parent=51 // pred_check_branch
          %997 = sbr.rel (%p995) target = $region56
        $region55: #{tpu_custom_call.1} parent=51 // pred_region
          %s998 = sand.u32 %s176, 1
          %s999 = scalar_lea.sflag [#allocation4], %s998
          %s1000 = sand.u32 %s176, 1
          %s1001 = smul.addr %s1000, 32
          %s1002 = scalar_lea.vmem [#allocation3], %s1001
          %1003 = dma.done %s999, 512
        $region56: #{tpu_custom_call.1} parent=51 // pred_fallthru
          _
      $region52: #{tpu_custom_call.1} parent=5 // pred_fallthru
        _
    $region6: #{tpu_custom_call.1} parent=1 // loop_footer
      %s18 = sadd.s32 1, %s14
    $region7: #{tpu_custom_call.1} parent=1 // loop_footer_branch
      %13 = sbr.rel target = $region3
    $region8: #{tpu_custom_call.1} parent=1 // loop_exit
      _
    %1004 = vsyncpa [#allocation4], 1
    %s1005 = scalar_lea.sflag [#allocation4], 1
    %1006 = vsyncpa %s1005, 1

</llo_original>
